<compile_context>
chip_gen: v5e
topology: v5e:2x2
jax: 0.10.0
libtpu: 0.0.40
codegen_flags: <defaults>
</compile_context>

<pallas_src>
import jax
import jax.numpy as jnp
from jax.experimental import pallas as pl
from jax.experimental.pallas import tpu as pltpu


# ----------------------------------------------------------------------------
# Pallas kernel: fused broadcast-add  out[m, n] = x[m, n] + pos[0, n]
# ----------------------------------------------------------------------------
def _pos_enc_kernel(x_ref, p_ref, o_ref):
    # x_ref: (tile_m, tile_n); p_ref: (1, tile_n) -> broadcasts over sublanes.
    o_ref[...] = x_ref[...] + p_ref[...]


# ----------------------------------------------------------------------------
# Sinusoid table (identical math to the PyTorch register_buffer)
# ----------------------------------------------------------------------------
def sinusoid_table(n_position, d_hid, dtype=jnp.float32):
    pos = jnp.arange(n_position, dtype=jnp.float32)[:, None]            # (P, 1)
    hid = jnp.arange(d_hid)                                             # (D,)
    denom = jnp.power(10000.0, (2.0 * (hid // 2)).astype(jnp.float32) / d_hid)
    angles = pos / denom[None, :]                                       # (P, D)
    table = jnp.where((hid % 2 == 0)[None, :], jnp.sin(angles), jnp.cos(angles))
    return table.astype(dtype)                                          # (P, D)


def _round_up(x, m):
    return pl.cdiv(x, m) * m


# ----------------------------------------------------------------------------
# Wrapper: layout plumbing (fold T*D into lanes, tile, no pad / no slice)
# ----------------------------------------------------------------------------
def positional_encoding(x, pos_table, *, max_tile_m=256, max_tile_n=4096,
                        donate_x=False):
    """x: (B, T, D); pos_table: (n_position, D).  Returns x + pos_table[:T]."""
    B, T, D = x.shape
    pos = pos_table[:T, :].astype(x.dtype)          # (T, D), add runs in x.dtype

    # Fold (T, D) into a single lane-dense axis: rows = batch, lanes = T*D.
    N = T * D
    x2 = x.reshape(B, N)
    p2 = pos.reshape(1, N)

    # Dtype-aware tile sizing: sublane multiple depends on element width.
    itemsize = jnp.dtype(x.dtype).itemsize
    sublane = {4: 8, 2: 16, 1: 32}.get(itemsize, 8)
    tile_m = min(max_tile_m, _round_up(B, sublane))   # multiple of `sublane`
    tile_n = min(max_tile_n, _round_up(N, 128))       # multiple of 128

    # Grid over the UNPADDED arrays: Pallas masks boundary blocks itself,
    # so no wrapper-side pad / slice HBM passes.
    # Row axis is the INNERMOST grid dim so the pos block (index (0, j)) stays
    # resident across consecutive steps.
    grid = (pl.cdiv(N, tile_n), pl.cdiv(B, tile_m))

    cost = pl.CostEstimate(
        flops=B * N,
        transcendentals=0,
        bytes_accessed=(2 * B * N + N) * itemsize,
    )

    out = pl.pallas_call(
        _pos_enc_kernel,
        out_shape=jax.ShapeDtypeStruct((B, N), x.dtype),
        grid=grid,
        in_specs=[
            pl.BlockSpec((tile_m, tile_n), lambda j, i: (i, j)),
            pl.BlockSpec((1, tile_n), lambda j, i: (0, j)),
        ],
        out_specs=pl.BlockSpec((tile_m, tile_n), lambda j, i: (i, j)),
        compiler_params=pltpu.CompilerParams(
            dimension_semantics=("parallel", "parallel"),
            vmem_limit_bytes=48 << 20,
        ),
        cost_estimate=cost,
        input_output_aliases={0: 0} if donate_x else {},
    )(x2, p2)

    return out.reshape(B, T, D)


# ----------------------------------------------------------------------------
if __name__ == "__main__":
    d_hid, n_position = 32, 200
    B, T = 2, 8

    key = jax.random.PRNGKey(0)
    x = jax.random.normal(key, (B, T, d_hid), jnp.float32)
    pos_table = sinusoid_table(n_position, d_hid)

    out = positional_encoding(x, pos_table)
    jax.block_until_ready(out)

    # Reference check against the exact PyTorch semantics.
    ref = x + pos_table[None, :T, :]
    assert out.shape == (B, T, d_hid), out.shape
    assert jnp.allclose(out, ref, atol=1e-6, rtol=1e-6)

    # Exercise the masked boundary-block path with an awkward (non-aligned) shape:
    # N = 400 lanes (block is 512), B = 5 rows (block is 8) -> both dims partial.
    B2, T2, D2 = 5, 10, 40
    x2 = jax.random.normal(jax.random.PRNGKey(1), (B2, T2, D2), jnp.float32)
    pos_table2 = sinusoid_table(n_position, D2)
    out2 = positional_encoding(x2, pos_table2)
    jax.block_until_ready(out2)
    ref2 = x2 + pos_table2[None, :T2, :]
    assert jnp.allclose(out2, ref2, atol=1e-6, rtol=1e-6)

    # bf16 path: exercises the dtype-aware (16, 128) sublane rounding.
    x3 = jax.random.normal(jax.random.PRNGKey(2), (3, T, d_hid), jnp.bfloat16)
    out3 = positional_encoding(x3, pos_table)
    jax.block_until_ready(out3)
    ref3 = x3 + pos_table[None, :T, :].astype(jnp.bfloat16)
    assert out3.dtype == jnp.bfloat16
    assert jnp.allclose(out3.astype(jnp.float32), ref3.astype(jnp.float32),
                        atol=2e-2, rtol=2e-2)

    print("KERNEL_OK")
</pallas_src>

<mosaic_0001>
module attributes {stable_mosaic.version = 11 : i64} {
  func.func @_pos_enc_kernel(%arg0: i32, %arg1: i32, %arg2: memref<8x256xf32, #tpu.memory_space<vmem>>, %arg3: memref<1x256xf32, #tpu.memory_space<vmem>>, %arg4: memref<8x256xf32, #tpu.memory_space<vmem>>) attributes {dimension_semantics = [#tpu.dimension_semantics<parallel>, #tpu.dimension_semantics<parallel>], iteration_bounds = array<i64: 1, 1>, scalar_prefetch = 0 : i64, scratch_operands = 0 : i64, tpu.core_type = #tpu.core_type<tc>, window_params = [{transform_indices = @transform_0, window_bounds = array<i64: 8, 256>}, {transform_indices = @transform_1, window_bounds = array<i64: 1, 256>}, {transform_indices = @transform_2, window_bounds = array<i64: 8, 256>}]} {
    %c0 = arith.constant 0 : index
    %c0_0 = arith.constant 0 : index
    %0 = vector.load %arg2[%c0, %c0_0] : memref<8x256xf32, #tpu.memory_space<vmem>>, vector<8x256xf32>
    %c0_1 = arith.constant 0 : index
    %c0_2 = arith.constant 0 : index
    %1 = vector.load %arg3[%c0_1, %c0_2] : memref<1x256xf32, #tpu.memory_space<vmem>>, vector<1x256xf32>
    %2 = vector.broadcast %1 : vector<1x256xf32> to vector<8x256xf32>
    %3 = arith.addf %0, %2 : vector<8x256xf32>
    %c0_3 = arith.constant 0 : index
    %c0_4 = arith.constant 0 : index
    %4 = vector.load %arg4[%c0_3, %c0_4] : memref<8x256xf32, #tpu.memory_space<vmem>>, vector<8x256xf32>
    tpu.vector_store %arg4[%c0_3, %c0_4], %3 {strides = array<i32>} : memref<8x256xf32, #tpu.memory_space<vmem>>, vector<8x256xf32>,
    return
  }
  func.func @transform_0(%arg0: i32, %arg1: i32) -> (i32, i32) {
    %c0_i32 = arith.constant 0 : i32
    return %arg1, %arg0 : i32, i32
  }
  func.func @transform_1(%arg0: i32, %arg1: i32) -> (i32, i32) {
    %c0_i32 = arith.constant 0 : i32
    %c0_i32_0 = arith.constant 0 : i32
    return %c0_i32, %arg0 : i32, i32
  }
  func.func @transform_2(%arg0: i32, %arg1: i32) -> (i32, i32) {
    %c0_i32 = arith.constant 0 : i32
    return %arg1, %arg0 : i32, i32
  }
}

</mosaic_0001>

<llo_original>
// kernel: tpu_custom_call.1
$region0: #{tpu_custom_call.1}
  #allocation0 [shape = 'u32[]', space=smem, size = 0x4, offset = 0x4, fixed_abs, tag = 'smem constant byte address 0x4 - core index']
  #allocation1 [shape = 'u32[72,128]{1,0:T(1,128)}', space=vmem, size = 0x9000, scoped, tag = 'internal scratch']
  %s0 = inlined_call_operand.hbm [shape: f32[2,256], index: 0, kind: input, shape index: {}]
  %s1 = inlined_call_operand.hbm [shape: f32[1,256], index: 1, kind: input, shape index: {}]
  %s2 = inlined_call_operand.hbm [shape: f32[2,256], index: 2, kind: output, shape index: {}]
  %s3 = sld [smem:[#allocation0]]
  $region26: #{tpu_custom_call.1} parent=0
    _
  %s5 = ssub.s32 1, %s3
  %s6 = scalar_select 0, %s5, %s3
  $region1: #{tpu_custom_call.1} parent=0
    #allocation2 [shape = 'u8[8192]{0}', space=vmem, size = 0x2000, scoped, tag = 'input window, operand 0, single buffered']
    #allocation3 [shape = 's32[1]{0}', space=sflag, size = 0x4, scoped, tag = 'scoped memory for tpu_custom_call.1']
    #allocation4 [shape = 's32[1]{0}', space=sflag, size = 0x4, scoped, tag = 'scoped memory for tpu_custom_call.1']
    #allocation5 [shape = 'u8[1024]{0}', space=vmem, size = 0x400, scoped, tag = 'input window, operand 1, single buffered']
    #allocation6 [shape = 's32[1]{0}', space=sflag, size = 0x4, scoped, tag = 'scoped memory for tpu_custom_call.1']
    #allocation7 [shape = 'u8[8192]{0}', space=vmem, size = 0x2000, scoped, tag = 'output window, operand 0, single buffered']
    %7 = vsyncpa [#allocation3], 0
    %8 = vsyncpa [#allocation6], 0
    %9 = vsyncpa [#allocation4], 0
    // Predicated region
    $region2: #{tpu_custom_call.1} parent=1 // pred_check
      _
    $region3: #{tpu_custom_call.1} parent=1 // pred_check_branch
      %11 = sbr.rel (0) target = $region5
    $region4: #{tpu_custom_call.1} parent=1 // pred_region
      %13 = vsyncadd [#allocation3], 192
      %s14 = sshll.u32 %s0, 4
      %s15 = int_to_ptr.hbm [resolvable:$true] %s14
      %s16 = sshll.u32 [#allocation2], 4
      %s17 = int_to_ptr.vmem [resolvable:$true] %s16
      %22 = dma.hbm_to_vmem [thread:$0]  %s15, 64, %s17, [#allocation3], 64, 64, 4
    $region5: #{tpu_custom_call.1} parent=1 // pred_fallthru
      _
    // Predicated region
    $region6: #{tpu_custom_call.1} parent=1 // pred_check
      _
    $region7: #{tpu_custom_call.1} parent=1 // pred_check_branch
      %24 = sbr.rel (0) target = $region9
    $region8: #{tpu_custom_call.1} parent=1 // pred_region
      %26 = vsyncadd [#allocation6], 0
      %s28 = sshll.u32 %s1, 4
      %s29 = int_to_ptr.hbm [resolvable:$true] %s28
      %s30 = sshll.u32 [#allocation5], 4
      %s31 = int_to_ptr.vmem [resolvable:$true] %s30
      %33 = dma.hbm_to_vmem [thread:$0]  %s29, 32, %s31, [#allocation6]
    $region9: #{tpu_custom_call.1} parent=1 // pred_fallthru
      _
    // Predicated region
    $region10: #{tpu_custom_call.1} parent=1 // pred_check
      _
    $region11: #{tpu_custom_call.1} parent=1 // pred_check_branch
      %35 = sbr.rel (0) target = $region13
    $region12: #{tpu_custom_call.1} parent=1 // pred_region
      %37 = dma.done [#allocation3], 256
    $region13: #{tpu_custom_call.1} parent=1 // pred_fallthru
      _
    // Predicated region
    $region14: #{tpu_custom_call.1} parent=1 // pred_check
      _
    $region15: #{tpu_custom_call.1} parent=1 // pred_check_branch
      %39 = sbr.rel (0) target = $region17
    $region16: #{tpu_custom_call.1} parent=1 // pred_region
      %41 = dma.done [#allocation6], 32
    $region17: #{tpu_custom_call.1} parent=1 // pred_fallthru
      _
    %v42 = vld [vmem:[#allocation2] sm:$0xf]
    %v43 = vld [vmem:[#allocation2 + $0x4] sm:$0xf]
    %v44 = vld [vmem:[#allocation2 + $0x8] sm:$0xf]
    %v45 = vld [vmem:[#allocation2 + $0xc] sm:$0xf]
    %v46 = vld [vmem:[#allocation5] sm:$0x3]
    %v48 = vperm.slane %v46, 0
    %v49 = vperm.slane %v46, 1
    %v50 = vrot.slane %v49, 6
    %vm51 = vcmask 1041408
    %v52 = vsel %vm51, %v48, %v50
    %vm53 = vcmask 1043458
    %v54 = vsel %vm53, %v48, %v50
    %v55 = vrot.slane %v54, 2
    %vm56 = vcmask 1045508
    %v57 = vsel %vm56, %v48, %v50
    %v58 = vrot.slane %v57, 4
    %vm59 = vcmask 1045504
    %v60 = vsel %vm59, %v50, %v48
    %v61 = vrot.slane %v60, 6
    %v66 = vadd.f32 %v42, %v52
    %v67 = vadd.f32 %v43, %v55
    %v68 = vadd.f32 %v44, %v58
    %v69 = vadd.f32 %v45, %v61
    %70 = vst [vmem:[#allocation7] sm:$0xf] %v66
    %71 = vst [vmem:[#allocation7 + $0x4] sm:$0xf] %v67
    %72 = vst [vmem:[#allocation7 + $0x8] sm:$0xf] %v68
    %73 = vst [vmem:[#allocation7 + $0xc] sm:$0xf] %v69
    // Predicated region
    $region18: #{tpu_custom_call.1} parent=1 // pred_check
      _
    $region19: #{tpu_custom_call.1} parent=1 // pred_check_branch
      %75 = sbr.rel (0) target = $region21
    $region20: #{tpu_custom_call.1} parent=1 // pred_region
      %77 = vsyncadd [#allocation4], 192
      %s78 = sshll.u32 [#allocation7], 4
      %s79 = int_to_ptr.vmem [resolvable:$true] %s78
      %s80 = sshll.u32 %s2, 4
      %s81 = int_to_ptr.hbm [resolvable:$true] %s80
      %86 = dma.vmem_to_hbm [thread:$0]  %s79, 64, %s81, [#allocation4], 64, 64, 4
    $region21: #{tpu_custom_call.1} parent=1 // pred_fallthru
      _
    // Predicated region
    $region22: #{tpu_custom_call.1} parent=1 // pred_check
      _
    $region23: #{tpu_custom_call.1} parent=1 // pred_check_branch
      %88 = sbr.rel (0) target = $region25
    $region24: #{tpu_custom_call.1} parent=1 // pred_region
      %90 = dma.done [#allocation4], 256
    $region25: #{tpu_custom_call.1} parent=1 // pred_fallthru
      _
    %91 = vsyncpa [#allocation3], 1
    %92 = vsyncpa [#allocation6], 1
    %93 = vsyncpa [#allocation4], 1

</llo_original>
